<compile_context>
chip_gen: v7x
topology: tpu7x:2x2x1
jax: 0.10.0
libtpu: 0.0.40
codegen_flags: <defaults>
</compile_context>

<pallas_src>
import jax
import jax.numpy as jnp
from jax.experimental import pallas as pl
from jax.experimental.pallas import tpu as pltpu


# ---------------------------------------------------------------------------
# Path A: lane-aligned slice folded into the BlockSpec DMA (tiled VMEM copy).
# ---------------------------------------------------------------------------
def _copy_kernel(x_ref, o_ref):
    # Both refs are (tile_b, output_size) VMEM tiles; the feature slice was
    # already performed by the input BlockSpec, so the body is a plain tile
    # copy, fully pipelined (default Buffered(2)) by the Pallas grid.
    o_ref[...] = x_ref[...]


def _pick_batch_tile(b, out_size, itemsize, max_tile_rows):
    """Largest batch tile that keeps ~4 double-buffered blocks well under the
    smallest default scoped-VMEM limit, rounded to the dtype's sublane
    multiple (8 rows for f32, 16 for bf16, 32 for int8)."""
    sublane = 8 * max(1, 4 // max(itemsize, 1))
    budget_bytes = 8 << 20  # headroom on every TPU generation
    max_rows = max(budget_bytes // (4 * max(out_size, 1) * itemsize), sublane)
    tb = min(b, max_tile_rows, max_rows)
    if tb >= b:
        return b  # single full-extent block is always a legal block shape
    return max((tb // sublane) * sublane, sublane)


def _aligned_copy(x, b, output_size, start, itemsize, max_tile_rows):
    feat_block_index = start // output_size
    tb = _pick_batch_tile(b, output_size, itemsize, max_tile_rows)
    grid = (pl.cdiv(b, tb),)
    return pl.pallas_call(
        _copy_kernel,
        out_shape=jax.ShapeDtypeStruct((b, output_size), x.dtype),
        grid=grid,
        in_specs=[pl.BlockSpec((tb, output_size),
                               lambda i: (i, feat_block_index))],
        out_specs=pl.BlockSpec((tb, output_size), lambda i: (i, 0)),
        compiler_params=pltpu.CompilerParams(
            dimension_semantics=("parallel",)),
    )(x)


# ---------------------------------------------------------------------------
# Path B: arbitrary slice start/width -> strided HBM->HBM DMA (no VMEM pass).
# ---------------------------------------------------------------------------
def _make_hbm_slice_kernel(start, output_size, chunks):
    """chunks: static tuple of (row_start, row_count) covering the batch."""
    def kernel(x_hbm, o_hbm, sems):
        copies = []
        for j, (r0, nr) in enumerate(chunks):
            cp = pltpu.make_async_copy(
                x_hbm.at[pl.ds(r0, nr), pl.ds(start, output_size)],
                o_hbm.at[pl.ds(r0, nr), :],
                sems.at[j])
            cp.start()          # all chunk DMAs in flight concurrently
            copies.append(cp)
        for cp in copies:
            cp.wait()
    return kernel


def _hbm_slice_copy(x, b, output_size, start, itemsize,
                    max_chunks=4, target_chunk_bytes=2 << 20):
    bytes_out = b * output_size * itemsize
    # A handful of concurrent DMAs for large transfers (separate engines);
    # a single descriptor is cheapest for small ones.
    n_chunks = int(max(1, min(max_chunks,
                              bytes_out // max(target_chunk_bytes, 1),
                              b)))
    rows = -(-b // n_chunks)  # ceil
    chunks, r = [], 0
    while r < b:
        nr = min(rows, b - r)
        chunks.append((r, nr))
        r += nr
    chunks = tuple(chunks)

    kernel = _make_hbm_slice_kernel(start, output_size, chunks)
    return pl.pallas_call(
        kernel,
        out_shape=jax.ShapeDtypeStruct((b, output_size), x.dtype),
        in_specs=[pl.BlockSpec(memory_space=pl.ANY)],
        out_specs=pl.BlockSpec(memory_space=pl.ANY),
        scratch_shapes=[pltpu.SemaphoreType.DMA((len(chunks),))],
    )(x)


# ---------------------------------------------------------------------------
# Wrapper: WANNOutput(outputSize).forward(x) = x[:, -outputSize:]
# ---------------------------------------------------------------------------
def wann_output(x: jax.Array, output_size: int, *,
                force_pallas: bool = False,
                max_tile_rows: int = 2048,
                dma_chunk_bytes: int = 2 << 20) -> jax.Array:
    b, f = x.shape
    assert 0 < output_size <= f
    start = f - output_size
    itemsize = jnp.dtype(x.dtype).itemsize

    # (1) Tiny-input bypass: XLA's native slice is effectively free here,
    #     while a pallas_call pays fixed launch / pipeline overhead.
    if not force_pallas and b * output_size * itemsize < (64 << 10):
        return x[:, start:]

    # (2) Slice start & width expressible as whole lane-aligned feature
    #     blocks -> fold the slice into the BlockSpec DMA.
    aligned = (start % output_size == 0) and (
        output_size == f or output_size % 128 == 0)
    if aligned:
        return _aligned_copy(x, b, output_size, start, itemsize, max_tile_rows)

    # (3) General case: strided HBM->HBM DMA of the (B, O) window.
    return _hbm_slice_copy(x, b, output_size, start, itemsize,
                           target_chunk_bytes=dma_chunk_bytes)


if __name__ == "__main__":
    key = jax.random.PRNGKey(0)
    k1, k2, k3, k4 = jax.random.split(key, 4)

    # Case 1: lane-aligned slice -> feature slice folded into the BlockSpec
    # DMA; batch tiled into a grid of 4 (max_tile_rows=16 forces multi-tile).
    b1, f1, o1 = 64, 256, 128
    x1 = jax.random.normal(k1, (b1, f1), dtype=jnp.float32)
    y1 = jax.block_until_ready(
        wann_output(x1, o1, force_pallas=True, max_tile_rows=16))
    assert y1.shape == (b1, o1) and y1.dtype == x1.dtype
    assert jnp.array_equal(y1, x1[:, -o1:])

    # Case 2: unaligned slice start/width -> direct strided HBM->HBM DMA.
    # Small dma_chunk_bytes forces the multi-chunk (concurrent-DMA) path.
    b2, f2, o2 = 32, 40, 24
    x2 = jax.random.normal(k2, (b2, f2), dtype=jnp.float32)
    y2 = jax.block_until_ready(
        wann_output(x2, o2, force_pallas=True, dma_chunk_bytes=1024))
    assert y2.shape == (b2, o2)
    assert jnp.array_equal(y2, x2[:, -o2:])

    # Case 3: tiny input (original 2x32 example) -> XLA slice bypass.
    b3, f3, o3 = 2, 32, 8
    x3 = jax.random.normal(k3, (b3, f3), dtype=jnp.float32)
    y3 = jax.block_until_ready(wann_output(x3, o3))
    assert y3.shape == (b3, o3)
    assert jnp.array_equal(y3, x3[:, -o3:])

    # Case 4: outputSize == features (identity slice) -> aligned path with a
    # single full-extent block.
    b4, f4 = 16, 24
    x4 = jax.random.normal(k4, (b4, f4), dtype=jnp.float32)
    y4 = jax.block_until_ready(wann_output(x4, f4, force_pallas=True))
    assert y4.shape == (b4, f4)
    assert jnp.array_equal(y4, x4)

    print("KERNEL_OK")
</pallas_src>

<mosaic_0001>
module attributes {stable_mosaic.version = 11 : i64} {
  func.func @_copy_kernel(%arg0: i32, %arg1: memref<16x128xf32, #tpu.memory_space<vmem>>, %arg2: memref<16x128xf32, #tpu.memory_space<vmem>>) attributes {dimension_semantics = [#tpu.dimension_semantics<parallel>], iteration_bounds = array<i64: 4>, scalar_prefetch = 0 : i64, scratch_operands = 0 : i64, tpu.core_type = #tpu.core_type<tc>, window_params = [{transform_indices = @transform_0, window_bounds = array<i64: 16, 128>}, {transform_indices = @transform_1, window_bounds = array<i64: 16, 128>}]} {
    %c0 = arith.constant 0 : index
    %c0_0 = arith.constant 0 : index
    %0 = vector.load %arg1[%c0, %c0_0] : memref<16x128xf32, #tpu.memory_space<vmem>>, vector<16x128xf32>
    %c0_1 = arith.constant 0 : index
    %c0_2 = arith.constant 0 : index
    %1 = vector.load %arg2[%c0_1, %c0_2] : memref<16x128xf32, #tpu.memory_space<vmem>>, vector<16x128xf32>
    tpu.vector_store %arg2[%c0_1, %c0_2], %0 {strides = array<i32>} : memref<16x128xf32, #tpu.memory_space<vmem>>, vector<16x128xf32>,
    return
  }
  func.func @transform_0(%arg0: i32) -> (i32, i32) {
    %c1_i32 = arith.constant 1 : i32
    %c0_i32 = arith.constant 0 : i32
    return %arg0, %c1_i32 : i32, i32
  }
  func.func @transform_1(%arg0: i32) -> (i32, i32) {
    %c0_i32 = arith.constant 0 : i32
    %c0_i32_0 = arith.constant 0 : i32
    return %arg0, %c0_i32 : i32, i32
  }
}

</mosaic_0001>

<llo_original>
// kernel: tpu_custom_call.1
$region0: #{tpu_custom_call.1}
  #allocation0 [shape = 'u32[]', space=smem, size = 0x4, offset = 0x4, fixed_abs, tag = 'smem constant byte address 0x4 - core index']
  #allocation1 [shape = 'u32[144,128]{1,0:T(1,128)}', space=vmem, size = 0x12000, scoped, tag = 'internal scratch']
  %s0 = inlined_call_operand.hbm [shape: f32[64,256], index: 0, kind: input, shape index: {}]
  %s1 = inlined_call_operand.hbm [shape: f32[64,128], index: 1, kind: output, shape index: {}]
  %s2 = sld [smem:[#allocation0]]
  $region41: #{tpu_custom_call.1} parent=0
    _
  %s4 = ssub.s32 1, %s2
  %s5 = scalar_select 0, %s4, %s2
  $region1: #{tpu_custom_call.1} parent=0
    #allocation2 [shape = 'u8[16384]{0}', space=vmem, size = 0x4000, scoped, tag = 'input window, operand 0']
    #allocation3 [shape = 's32[2]{0}', space=sflag, size = 0x8, scoped, tag = 'scoped memory for tpu_custom_call.1']
    #allocation4 [shape = 's32[2]{0}', space=sflag, size = 0x8, scoped, tag = 'scoped memory for tpu_custom_call.1']
    #allocation5 [shape = 'u8[16384]{0}', space=vmem, size = 0x4000, scoped, tag = 'output window, operand 0']
    %6 = vsyncpa [#allocation3], 0
    %s7 = scalar_lea.sflag [#allocation3], 1
    %8 = vsyncpa %s7, 0
    %9 = vsyncpa [#allocation4], 0
    %s10 = scalar_lea.sflag [#allocation4], 1
    %11 = vsyncpa %s10, 0
    loop: start=0, step=1, limit=6
    $region2: #{tpu_custom_call.1} parent=1 // loop_pre_header
      _
    $region3: #{tpu_custom_call.1} parent=1 // loop_header
      %s13 = sphi 0, %s17
      %p14 = scmp.ge.s32.totalorder %s13, 6
      %s23 = sphi 0, %s25
      %s26 = sphi 0, %s23
      %s27 = sphi 0, %s26
      %s43 = sphi 0, %s27
      %s49 = sphi 0, %s51
      %s52 = sphi 0, %s49
      %s53 = sphi 0, %s52
      %s69 = sphi 0, %s53
    $region4: #{tpu_custom_call.1} parent=1 // loop_header_branch
      %16 = sbr.rel (%p14) target = $region8
    $region5: #{tpu_custom_call.1} parent=1 // loop_body
      %s18 = ssub.s32 %s13, 1
      %s19 = ssub.s32 %s13, 2
      %s20 = sadd.s32 %s13, 1
      %s21 = ssub.s32 %s13, %s20
      %p22 = scmp.eq.s32.totalorder %s21, 0
      %s24 = sadd.s32 %s23, 1
      %s25 = scalar_select %p22, %s23, %s24
      %p28 = pneg %p22
      %p29 = scmp.eq.s32.totalorder %s13, 3
      %p30 = por %p28, %p29
      %p31 = scmp.ne.s32.totalorder %s23, %s26
      %p32 = scmp.eq.s32.totalorder %s13, 0
      %p33 = por %p31, %p32
      %p34 = scmp.ne.s32.totalorder %s23, %s26
      %p35 = scmp.eq.s32.totalorder %s18, 3
      %p36 = por %p34, %p35
      %p37 = scmp.ne.s32.totalorder %s26, %s27
      %p38 = scmp.eq.s32.totalorder %s18, 0
      %p39 = por %p37, %p38
      %p40 = scmp.ne.s32.totalorder %s26, %s27
      %p41 = scmp.eq.s32.totalorder %s19, 3
      %p42 = por %p40, %p41
      %p44 = scmp.ne.s32.totalorder %s27, %s43
      %p45 = scmp.eq.s32.totalorder %s19, 0
      %p46 = por %p44, %p45
      %s47 = ssub.s32 %s13, %s20
      %p48 = scmp.eq.s32.totalorder %s47, 0
      %s50 = sadd.s32 %s49, 1
      %s51 = scalar_select %p48, %s49, %s50
      %p54 = pneg %p48
      %p55 = scmp.eq.s32.totalorder %s13, 3
      %p56 = por %p54, %p55
      %p57 = scmp.ne.s32.totalorder %s49, %s52
      %p58 = scmp.eq.s32.totalorder %s13, 0
      %p59 = por %p57, %p58
      %p60 = scmp.ne.s32.totalorder %s49, %s52
      %p61 = scmp.eq.s32.totalorder %s18, 3
      %p62 = por %p60, %p61
      %p63 = scmp.ne.s32.totalorder %s52, %s53
      %p64 = scmp.eq.s32.totalorder %s18, 0
      %p65 = por %p63, %p64
      %p66 = scmp.ne.s32.totalorder %s52, %s53
      %p67 = scmp.eq.s32.totalorder %s19, 3
      %p68 = por %p66, %p67
      %p70 = scmp.ne.s32.totalorder %s53, %s69
      %p71 = scmp.eq.s32.totalorder %s19, 0
      %p72 = por %p70, %p71
      %p73 = scmp.le.s32.totalorder 1, %s13
      %p74 = scmp.lt.s32.totalorder %s13, 5
      %p75 = pnand %p73, %p74
      %p76 = pneg %p75
      // Predicated region
      $region9: #{tpu_custom_call.1} parent=5 // pred_check
        _
      $region10: #{tpu_custom_call.1} parent=5 // pred_check_branch
        %78 = sbr.rel (%p75) target = $region12
      $region11: #{tpu_custom_call.1} parent=5 // pred_region
        %s79 = ssub.s32 %s13, 1
      $region12: #{tpu_custom_call.1} parent=5 // pred_fallthru
        _
      %p80 = scmp.lt.s32.totalorder %s13, 4
      // Predicated region
      $region13: #{tpu_custom_call.1} parent=5 // pred_check
        %p81 = pneg %p80
      $region14: #{tpu_custom_call.1} parent=5 // pred_check_branch
        %83 = sbr.rel (%p81) target = $region16
      $region15: #{tpu_custom_call.1} parent=5 // pred_region
        // Predicated region
        $region17: #{tpu_custom_call.1} parent=15 // pred_check
          %p84 = pneg %p33
        $region18: #{tpu_custom_call.1} parent=15 // pred_check_branch
          %86 = sbr.rel (%p84) target = $region20
        $region19: #{tpu_custom_call.1} parent=15 // pred_region
          %s87 = sand.u32 %s23, 1
          %s88 = scalar_lea.sflag [#allocation3], %s87
          %s89 = sand.u32 %s23, 1
          %s90 = smul.addr %s89, 16
          %s91 = scalar_lea.vmem [#allocation2], %s90
          %s92 = smul.u32 2, %s13
          %s94 = ssub.s32 256, 256
          %95 = vsyncadd %s88, %s94
          %s96 = smul.addr %s92, 2
          %s97 = sadd.s32 1, %s96
          %s98 = smul.addr %s97, 128
          %s99 = scalar_lea.hbm %s0, %s98
          %s100 = sshll.u32 %s91, 4
          %s101 = int_to_ptr.vmem [resolvable:$true] %s100
          %106 = dma.hbm_to_vmem [thread:$0]  %s99, 256, %s101, %s88, 256, 128, 8
        $region20: #{tpu_custom_call.1} parent=15 // pred_fallthru
          _
      $region16: #{tpu_custom_call.1} parent=5 // pred_fallthru
        _
      %p107 = scmp.le.s32.totalorder 1, %s13
      %p108 = scmp.lt.s32.totalorder %s13, 5
      %p109 = pnand %p107, %p108
      %p110 = pneg %p109
      // Predicated region
      $region21: #{tpu_custom_call.1} parent=5 // pred_check
        _
      $region22: #{tpu_custom_call.1} parent=5 // pred_check_branch
        %112 = sbr.rel (%p109) target = $region24
      $region23: #{tpu_custom_call.1} parent=5 // pred_region
        %s113 = ssub.s32 %s13, 1
        %s114 = sand.u32 %s26, 1
        %s115 = scalar_lea.sflag [#allocation3], %s114
        %s116 = sand.u32 %s26, 1
        %s117 = smul.addr %s116, 16
        %s118 = scalar_lea.vmem [#allocation2], %s117
        // Predicated region
        $region25: #{tpu_custom_call.1} parent=23 // pred_check
          %p119 = pneg %p39
        $region26: #{tpu_custom_call.1} parent=23 // pred_check_branch
          %121 = sbr.rel (%p119) target = $region28
        $region27: #{tpu_custom_call.1} parent=23 // pred_region
          %122 = dma.done %s115, 256
        $region28: #{tpu_custom_call.1} parent=23 // pred_fallthru
          _
        %s123 = sand.u32 %s26, 1
        %s124 = scalar_lea.sflag [#allocation3], %s123
        %s125 = sand.u32 %s26, 1
        %s126 = smul.addr %s125, 16
        %s127 = scalar_lea.vmem [#allocation2], %s126
        %p128 = pneg %p39
        %p129 = pneg %p36
        %p130 = pneg %p65
        %p131 = pneg %p62
        %s132 = sand.u32 %s52, 1
        %s133 = scalar_lea.sflag [#allocation4], %s132
        %s134 = sand.u32 %s52, 1
        %s135 = smul.addr %s134, 16
        %s136 = scalar_lea.vmem [#allocation5], %s135
        %s137 = smul.u32 2, %s18
        %s138 = smul.u32 2, %s18
        %v139 = vld [vmem:[%s118] sm:$0xff]
        %v140 = vld [vmem:[%s118 + $0x8] sm:$0xff]
        %141 = vst [vmem:[%s136] sm:$0xff] %v139
        %142 = vst [vmem:[%s136 + $0x8] sm:$0xff] %v140
        %s143 = sand.u32 %s52, 1
        %s144 = scalar_lea.sflag [#allocation4], %s143
        %s145 = sand.u32 %s52, 1
        %s146 = smul.addr %s145, 16
        %s147 = scalar_lea.vmem [#allocation5], %s146
        // Predicated region
        $region29: #{tpu_custom_call.1} parent=23 // pred_check
          %p148 = pneg %p62
        $region30: #{tpu_custom_call.1} parent=23 // pred_check_branch
          %150 = sbr.rel (%p148) target = $region32
        $region31: #{tpu_custom_call.1} parent=23 // pred_region
          %s151 = smul.u32 2, %s18
          %s153 = ssub.s32 256, 256
          %154 = vsyncadd %s144, %s153
          %s155 = smul.addr %s151, 128
          %s156 = scalar_lea.hbm %s1, %s155
          %s157 = sshll.u32 %s147, 4
          %s158 = int_to_ptr.vmem [resolvable:$true] %s157
          %163 = dma.vmem_to_hbm [thread:$0]  %s158, 256, %s156, %s144, 128, 128, 8
        $region32: #{tpu_custom_call.1} parent=23 // pred_fallthru
          _
      $region24: #{tpu_custom_call.1} parent=5 // pred_fallthru
        _
      %p164 = scmp.le.s32.totalorder 2, %s13
      // Predicated region
      $region33: #{tpu_custom_call.1} parent=5 // pred_check
        %p165 = pneg %p164
      $region34: #{tpu_custom_call.1} parent=5 // pred_check_branch
        %167 = sbr.rel (%p165) target = $region36
      $region35: #{tpu_custom_call.1} parent=5 // pred_region
        %s168 = ssub.s32 %s13, 2
        // Predicated region
        $region37: #{tpu_custom_call.1} parent=35 // pred_check
          %p169 = pneg %p68
        $region38: #{tpu_custom_call.1} parent=35 // pred_check_branch
          %171 = sbr.rel (%p169) target = $region40
        $region39: #{tpu_custom_call.1} parent=35 // pred_region
          %s172 = sand.u32 %s53, 1
          %s173 = scalar_lea.sflag [#allocation4], %s172
          %s174 = sand.u32 %s53, 1
          %s175 = smul.addr %s174, 16
          %s176 = scalar_lea.vmem [#allocation5], %s175
          %177 = dma.done %s173, 256
        $region40: #{tpu_custom_call.1} parent=35 // pred_fallthru
          _
      $region36: #{tpu_custom_call.1} parent=5 // pred_fallthru
        _
    $region6: #{tpu_custom_call.1} parent=1 // loop_footer
      %s17 = sadd.s32 1, %s13
    $region7: #{tpu_custom_call.1} parent=1 // loop_footer_branch
      %12 = sbr.rel target = $region3
    $region8: #{tpu_custom_call.1} parent=1 // loop_exit
      _
    %178 = vsyncpa [#allocation3], 1
    %s179 = scalar_lea.sflag [#allocation3], 1
    %180 = vsyncpa %s179, 1
    %181 = vsyncpa [#allocation4], 1
    %s182 = scalar_lea.sflag [#allocation4], 1
    %183 = vsyncpa %s182, 1

</llo_original>
